<compile_context>
chip_gen: v7x
topology: tpu7x:2x2x1
jax: 0.10.0
libtpu: 0.0.40
codegen_flags: <defaults>
</compile_context>

<pallas_src>
import jax
import jax.numpy as jnp
from jax.experimental import pallas as pl
from jax.experimental.pallas import tpu as pltpu


def _sobel_l1_kernel(org_ref, rec_ref, out_ref, opad_ref, rpad_ref, acc_ref):
    """One grid step over a block of BB batch images (channel 0 only).

    org_ref / rec_ref : (BB, H, W) unpadded image blocks (input dtype)
    out_ref           : (1, 1) f32 total sum of |grad_org - grad_rec|
    opad_ref/rpad_ref : (BB, H+2, W+2) f32 zero-border scratch (conv halo)
    acc_ref           : (H, W) f32 running partial sums
    """
    g = pl.program_id(0)
    nsteps = pl.num_programs(0)
    BB, H, W = org_ref.shape

    @pl.when(g == 0)
    def _init():
        # Zero once: the 1-pixel borders stay zero forever (conv2d padding=1);
        # interiors are fully overwritten every step.
        opad_ref[...] = jnp.zeros_like(opad_ref)
        rpad_ref[...] = jnp.zeros_like(rpad_ref)
        acc_ref[...] = jnp.zeros_like(acc_ref)

    # Load at input width, cast on the VPU (free under the HBM bottleneck).
    opad_ref[:, 1:H + 1, 1:W + 1] = org_ref[...].astype(jnp.float32)
    rpad_ref[:, 1:H + 1, 1:W + 1] = rec_ref[...].astype(jnp.float32)

    def sobel_grad(pad_ref):
        xp = pad_ref[...]                 # (BB, H+2, W+2), zero borders
        xl = xp[:, :, 0:W]                # x(:, j-1)
        xc = xp[:, :, 1:W + 1]            # x(:, j)
        xr = xp[:, :, 2:W + 2]            # x(:, j+1)
        # Separable Sobel: horizontal pass, then vertical pass.
        d = xr - xl                       # (BB, H+2, W)
        sm = xl + 2.0 * xc + xr           # (BB, H+2, W)
        gx = d[:, 0:H] + 2.0 * d[:, 1:H + 1] + d[:, 2:H + 2]
        gy = sm[:, 0:H] - sm[:, 2:H + 2]
        return jnp.abs(gx) + jnp.abs(gy)

    diff = jnp.abs(sobel_grad(opad_ref) - sobel_grad(rpad_ref))
    # Per-step cost: only fold the batch axis (pure VPU adds).
    acc_ref[...] += jnp.sum(diff, axis=0)

    @pl.when(g == nsteps - 1)
    def _finalize():
        # Single cross-lane/sublane reduce + single narrow store.
        out_ref[...] = jnp.sum(acc_ref[...], keepdims=True)


def fusion_loss_stage1(img_org, img_rec, block_b=None,
                       vmem_budget_bytes=40 * 1024 * 1024):
    """Pallas equivalent of Fusion_loss_stage1.forward for NCHW inputs."""
    B, C, H, W = img_org.shape
    assert img_rec.shape == img_org.shape
    in_bytes = jnp.dtype(img_org.dtype).itemsize

    if block_b is None:
        # Largest divisor of B whose double-buffered footprint fits the budget.
        block_b = 1
        for cand in range(1, B + 1):
            if B % cand:
                continue
            footprint = (
                2 * 2 * cand * H * W * in_bytes          # 2 inputs x 2 pipeline bufs
                + 2 * cand * (H + 2) * (W + 2) * 4       # padded f32 scratches
                + H * W * 4)                             # accumulator
            if footprint <= vmem_budget_bytes:
                block_b = cand
    assert B % block_b == 0, (B, block_b)

    total = pl.pallas_call(
        _sobel_l1_kernel,
        out_shape=jax.ShapeDtypeStruct((1, 1), jnp.float32),
        grid_spec=pltpu.PrefetchScalarGridSpec(
            num_scalar_prefetch=0,
            grid=(B // block_b,),
            in_specs=[
                # Channel dim squeezed to channel 0 straight from NCHW in HBM:
                # no wrapper-side channel slice, pad, or dtype-cast copies.
                pl.BlockSpec((block_b, None, H, W), lambda g: (g, 0, 0, 0)),
                pl.BlockSpec((block_b, None, H, W), lambda g: (g, 0, 0, 0)),
            ],
            out_specs=pl.BlockSpec((1, 1), lambda g: (0, 0)),
            scratch_shapes=[
                pltpu.VMEM((block_b, H + 2, W + 2), jnp.float32),
                pltpu.VMEM((block_b, H + 2, W + 2), jnp.float32),
                pltpu.VMEM((H, W), jnp.float32),
            ],
        ),
        compiler_params=pltpu.CompilerParams(
            dimension_semantics=("arbitrary",),
            vmem_limit_bytes=64 * 1024 * 1024,
        ),
    )(img_org, img_rec)

    # F.l1_loss(reduction='mean') over the (B, 1, H, W) gradient maps.
    return total[0, 0] / jnp.float32(B * H * W)


def _reference(img_org, img_rec):
    """Pure-JAX reference (matches the PyTorch module's forward)."""
    def grad(x):
        xp = jnp.pad(x, ((0, 0), (1, 1), (1, 1)))
        H, W = x.shape[1], x.shape[2]
        s = lambda i, j: xp[:, i:i + H, j:j + W]
        gx = -s(0, 0) + s(0, 2) - 2 * s(1, 0) + 2 * s(1, 2) - s(2, 0) + s(2, 2)
        gy = s(0, 0) + 2 * s(0, 1) + s(0, 2) - s(2, 0) - 2 * s(2, 1) - s(2, 2)
        return jnp.abs(gx) + jnp.abs(gy)

    go = grad(img_org[:, 0].astype(jnp.float32))
    gr = grad(img_rec[:, 0].astype(jnp.float32))
    return jnp.mean(jnp.abs(go - gr))


if __name__ == "__main__":
    key = jax.random.PRNGKey(0)
    k1, k2 = jax.random.split(key)
    B, C, H, W = 2, 4, 16, 16
    img_org = jax.random.uniform(k1, (B, C, H, W), dtype=jnp.float32)
    img_rec = jax.random.uniform(k2, (B, C, H, W), dtype=jnp.float32)

    loss = fusion_loss_stage1(img_org, img_rec)
    loss = jax.block_until_ready(loss)

    ref = _reference(img_org, img_rec)
    assert jnp.allclose(loss, ref, rtol=1e-5, atol=1e-5), (loss, ref)
    print("KERNEL_OK")
</pallas_src>

<mosaic_0001>
module attributes {stable_mosaic.version = 11 : i64} {
  func.func @_sobel_l1_kernel(%arg0: i32, %arg1: memref<2x1x16x16xf32, #tpu.memory_space<vmem>>, %arg2: memref<2x1x16x16xf32, #tpu.memory_space<vmem>>, %arg3: memref<1x1xf32, #tpu.memory_space<vmem>>, %arg4: memref<2x18x18xf32, #tpu.memory_space<vmem>>, %arg5: memref<2x18x18xf32, #tpu.memory_space<vmem>>, %arg6: memref<16x16xf32, #tpu.memory_space<vmem>>) attributes {dimension_semantics = [#tpu.dimension_semantics<arbitrary>], iteration_bounds = array<i64: 1>, scalar_prefetch = 0 : i64, scratch_operands = 3 : i64, tpu.core_type = #tpu.core_type<tc>, window_params = [{transform_indices = @transform_0, window_bounds = array<i64: 2, 1, 16, 16>}, {transform_indices = @transform_1, window_bounds = array<i64: 2, 1, 16, 16>}, {pipeline_mode = #tpu.pipeline_mode<synchronous>, transform_indices = @transform_2, window_bounds = array<i64: 1, 1>}]} {
    %c0_i32 = arith.constant 0 : i32
    %0 = arith.cmpi eq, %arg0, %c0_i32 : i32
    %1 = arith.extui %0 : i1 to i32
    %c0_i32_0 = arith.constant 0 : i32
    %2 = arith.cmpi ne, %1, %c0_i32_0 : i32
    scf.if %2 {
      %cst_29 = arith.constant 0.000000e+00 : f32
      %62 = vector.broadcast %cst_29 : f32 to vector<2x18x18xf32>
      %c0_30 = arith.constant 0 : index
      %c0_31 = arith.constant 0 : index
      %c0_32 = arith.constant 0 : index
      %63 = vector.load %arg4[%c0_30, %c0_31, %c0_32] : memref<2x18x18xf32, #tpu.memory_space<vmem>>, vector<2x18x18xf32>
      tpu.vector_store %arg4[%c0_30, %c0_31, %c0_32], %62 {strides = array<i32>} : memref<2x18x18xf32, #tpu.memory_space<vmem>>, vector<2x18x18xf32>,
      %cst_33 = arith.constant 0.000000e+00 : f32
      %64 = vector.broadcast %cst_33 : f32 to vector<2x18x18xf32>
      %c0_34 = arith.constant 0 : index
      %c0_35 = arith.constant 0 : index
      %c0_36 = arith.constant 0 : index
      %65 = vector.load %arg5[%c0_34, %c0_35, %c0_36] : memref<2x18x18xf32, #tpu.memory_space<vmem>>, vector<2x18x18xf32>
      tpu.vector_store %arg5[%c0_34, %c0_35, %c0_36], %64 {strides = array<i32>} : memref<2x18x18xf32, #tpu.memory_space<vmem>>, vector<2x18x18xf32>,
      %cst_37 = arith.constant 0.000000e+00 : f32
      %66 = vector.broadcast %cst_37 : f32 to vector<16x16xf32>
      %c0_38 = arith.constant 0 : index
      %c0_39 = arith.constant 0 : index
      %67 = vector.load %arg6[%c0_38, %c0_39] : memref<16x16xf32, #tpu.memory_space<vmem>>, vector<16x16xf32>
      tpu.vector_store %arg6[%c0_38, %c0_39], %66 {strides = array<i32>} : memref<16x16xf32, #tpu.memory_space<vmem>>, vector<16x16xf32>,
    } else {
    }
    %c0 = arith.constant 0 : index
    %c0_1 = arith.constant 0 : index
    %c0_2 = arith.constant 0 : index
    %c0_3 = arith.constant 0 : index
    %3 = vector.load %arg1[%c0, %c0_1, %c0_2, %c0_3] : memref<2x1x16x16xf32, #tpu.memory_space<vmem>>, vector<2x1x16x16xf32>
    %4 = vector.shape_cast %3 : vector<2x1x16x16xf32> to vector<2x16x16xf32>
    %c0_4 = arith.constant 0 : index
    %c1 = arith.constant 1 : index
    %c1_5 = arith.constant 1 : index
    %5 = vector.load %arg4[%c0_4, %c1, %c1_5] : memref<2x18x18xf32, #tpu.memory_space<vmem>>, vector<2x16x16xf32>
    tpu.vector_store %arg4[%c0_4, %c1, %c1_5], %4 {strides = array<i32>} : memref<2x18x18xf32, #tpu.memory_space<vmem>>, vector<2x16x16xf32>,
    %c0_6 = arith.constant 0 : index
    %c0_7 = arith.constant 0 : index
    %c0_8 = arith.constant 0 : index
    %c0_9 = arith.constant 0 : index
    %6 = vector.load %arg2[%c0_6, %c0_7, %c0_8, %c0_9] : memref<2x1x16x16xf32, #tpu.memory_space<vmem>>, vector<2x1x16x16xf32>
    %7 = vector.shape_cast %6 : vector<2x1x16x16xf32> to vector<2x16x16xf32>
    %c0_10 = arith.constant 0 : index
    %c1_11 = arith.constant 1 : index
    %c1_12 = arith.constant 1 : index
    %8 = vector.load %arg5[%c0_10, %c1_11, %c1_12] : memref<2x18x18xf32, #tpu.memory_space<vmem>>, vector<2x16x16xf32>
    tpu.vector_store %arg5[%c0_10, %c1_11, %c1_12], %7 {strides = array<i32>} : memref<2x18x18xf32, #tpu.memory_space<vmem>>, vector<2x16x16xf32>,
    %c0_13 = arith.constant 0 : index
    %c0_14 = arith.constant 0 : index
    %c0_15 = arith.constant 0 : index
    %9 = vector.load %arg4[%c0_13, %c0_14, %c0_15] : memref<2x18x18xf32, #tpu.memory_space<vmem>>, vector<2x18x18xf32>
    %10 = vector.extract_strided_slice %9 {offsets = [0, 0, 0], sizes = [2, 18, 16], strides = [1, 1, 1]} : vector<2x18x18xf32> to vector<2x18x16xf32>
    %11 = vector.extract_strided_slice %9 {offsets = [0, 0, 1], sizes = [2, 18, 16], strides = [1, 1, 1]} : vector<2x18x18xf32> to vector<2x18x16xf32>
    %12 = vector.extract_strided_slice %9 {offsets = [0, 0, 2], sizes = [2, 18, 16], strides = [1, 1, 1]} : vector<2x18x18xf32> to vector<2x18x16xf32>
    %13 = arith.subf %12, %10 : vector<2x18x16xf32>
    %cst = arith.constant 2.000000e+00 : f32
    %14 = vector.broadcast %cst : f32 to vector<2x18x16xf32>
    %15 = arith.mulf %14, %11 : vector<2x18x16xf32>
    %16 = arith.addf %10, %15 : vector<2x18x16xf32>
    %17 = arith.addf %16, %12 : vector<2x18x16xf32>
    %18 = vector.extract_strided_slice %13 {offsets = [0, 0, 0], sizes = [2, 16, 16], strides = [1, 1, 1]} : vector<2x18x16xf32> to vector<2x16x16xf32>
    %19 = vector.extract_strided_slice %13 {offsets = [0, 1, 0], sizes = [2, 16, 16], strides = [1, 1, 1]} : vector<2x18x16xf32> to vector<2x16x16xf32>
    %cst_16 = arith.constant 2.000000e+00 : f32
    %20 = vector.broadcast %cst_16 : f32 to vector<2x16x16xf32>
    %21 = arith.mulf %20, %19 : vector<2x16x16xf32>
    %22 = arith.addf %18, %21 : vector<2x16x16xf32>
    %23 = vector.extract_strided_slice %13 {offsets = [0, 2, 0], sizes = [2, 16, 16], strides = [1, 1, 1]} : vector<2x18x16xf32> to vector<2x16x16xf32>
    %24 = arith.addf %22, %23 : vector<2x16x16xf32>
    %25 = vector.extract_strided_slice %17 {offsets = [0, 0, 0], sizes = [2, 16, 16], strides = [1, 1, 1]} : vector<2x18x16xf32> to vector<2x16x16xf32>
    %26 = vector.extract_strided_slice %17 {offsets = [0, 2, 0], sizes = [2, 16, 16], strides = [1, 1, 1]} : vector<2x18x16xf32> to vector<2x16x16xf32>
    %27 = arith.subf %25, %26 : vector<2x16x16xf32>
    %28 = math.absf %24 : vector<2x16x16xf32>
    %29 = math.absf %27 : vector<2x16x16xf32>
    %30 = arith.addf %28, %29 : vector<2x16x16xf32>
    %c0_17 = arith.constant 0 : index
    %c0_18 = arith.constant 0 : index
    %c0_19 = arith.constant 0 : index
    %31 = vector.load %arg5[%c0_17, %c0_18, %c0_19] : memref<2x18x18xf32, #tpu.memory_space<vmem>>, vector<2x18x18xf32>
    %32 = vector.extract_strided_slice %31 {offsets = [0, 0, 0], sizes = [2, 18, 16], strides = [1, 1, 1]} : vector<2x18x18xf32> to vector<2x18x16xf32>
    %33 = vector.extract_strided_slice %31 {offsets = [0, 0, 1], sizes = [2, 18, 16], strides = [1, 1, 1]} : vector<2x18x18xf32> to vector<2x18x16xf32>
    %34 = vector.extract_strided_slice %31 {offsets = [0, 0, 2], sizes = [2, 18, 16], strides = [1, 1, 1]} : vector<2x18x18xf32> to vector<2x18x16xf32>
    %35 = arith.subf %34, %32 : vector<2x18x16xf32>
    %cst_20 = arith.constant 2.000000e+00 : f32
    %36 = vector.broadcast %cst_20 : f32 to vector<2x18x16xf32>
    %37 = arith.mulf %36, %33 : vector<2x18x16xf32>
    %38 = arith.addf %32, %37 : vector<2x18x16xf32>
    %39 = arith.addf %38, %34 : vector<2x18x16xf32>
    %40 = vector.extract_strided_slice %35 {offsets = [0, 0, 0], sizes = [2, 16, 16], strides = [1, 1, 1]} : vector<2x18x16xf32> to vector<2x16x16xf32>
    %41 = vector.extract_strided_slice %35 {offsets = [0, 1, 0], sizes = [2, 16, 16], strides = [1, 1, 1]} : vector<2x18x16xf32> to vector<2x16x16xf32>
    %cst_21 = arith.constant 2.000000e+00 : f32
    %42 = vector.broadcast %cst_21 : f32 to vector<2x16x16xf32>
    %43 = arith.mulf %42, %41 : vector<2x16x16xf32>
    %44 = arith.addf %40, %43 : vector<2x16x16xf32>
    %45 = vector.extract_strided_slice %35 {offsets = [0, 2, 0], sizes = [2, 16, 16], strides = [1, 1, 1]} : vector<2x18x16xf32> to vector<2x16x16xf32>
    %46 = arith.addf %44, %45 : vector<2x16x16xf32>
    %47 = vector.extract_strided_slice %39 {offsets = [0, 0, 0], sizes = [2, 16, 16], strides = [1, 1, 1]} : vector<2x18x16xf32> to vector<2x16x16xf32>
    %48 = vector.extract_strided_slice %39 {offsets = [0, 2, 0], sizes = [2, 16, 16], strides = [1, 1, 1]} : vector<2x18x16xf32> to vector<2x16x16xf32>
    %49 = arith.subf %47, %48 : vector<2x16x16xf32>
    %50 = math.absf %46 : vector<2x16x16xf32>
    %51 = math.absf %49 : vector<2x16x16xf32>
    %52 = arith.addf %50, %51 : vector<2x16x16xf32>
    %53 = arith.subf %30, %52 : vector<2x16x16xf32>
    %54 = math.absf %53 : vector<2x16x16xf32>
    %c0_22 = arith.constant 0 : index
    %c0_23 = arith.constant 0 : index
    %55 = vector.load %arg6[%c0_22, %c0_23] : memref<16x16xf32, #tpu.memory_space<vmem>>, vector<16x16xf32>
    %cst_24 = arith.constant dense<0.000000e+00> : vector<16x16xf32>
    %56 = vector.multi_reduction <add>, %54, %cst_24 [0] : vector<2x16x16xf32> to vector<16x16xf32>
    %57 = arith.addf %55, %56 : vector<16x16xf32>
    %c0_25 = arith.constant 0 : index
    %c0_26 = arith.constant 0 : index
    %58 = vector.load %arg6[%c0_25, %c0_26] : memref<16x16xf32, #tpu.memory_space<vmem>>, vector<16x16xf32>
    tpu.vector_store %arg6[%c0_25, %c0_26], %57 {strides = array<i32>} : memref<16x16xf32, #tpu.memory_space<vmem>>, vector<16x16xf32>,
    %c0_i32_27 = arith.constant 0 : i32
    %59 = arith.cmpi eq, %arg0, %c0_i32_27 : i32
    %60 = arith.extui %59 : i1 to i32
    %c0_i32_28 = arith.constant 0 : i32
    %61 = arith.cmpi ne, %60, %c0_i32_28 : i32
    scf.if %61 {
      %c0_29 = arith.constant 0 : index
      %c0_30 = arith.constant 0 : index
      %62 = vector.load %arg6[%c0_29, %c0_30] : memref<16x16xf32, #tpu.memory_space<vmem>>, vector<16x16xf32>
      %63 = vector.shape_cast %62 : vector<16x16xf32> to vector<1x16x16xf32>
      %cst_31 = arith.constant dense<0.000000e+00> : vector<1xf32>
      %64 = vector.multi_reduction <add>, %63, %cst_31 [1, 2] : vector<1x16x16xf32> to vector<1xf32>
      %65 = vector.shape_cast %64 : vector<1xf32> to vector<1x1x1xf32>
      %66 = vector.extract %65[0, 0, 0] : f32 from vector<1x1x1xf32>
      %67 = vector.broadcast %66 : f32 to vector<1x1xf32>
      %c0_32 = arith.constant 0 : index
      %c0_33 = arith.constant 0 : index
      %68 = vector.load %arg3[%c0_32, %c0_33] : memref<1x1xf32, #tpu.memory_space<vmem>>, vector<1x1xf32>
      tpu.vector_store %arg3[%c0_32, %c0_33], %67 {strides = array<i32>} : memref<1x1xf32, #tpu.memory_space<vmem>>, vector<1x1xf32>,
    } else {
    }
    return
  }
  func.func @transform_0(%arg0: i32) -> (i32, i32, i32, i32) {
    %c0_i32 = arith.constant 0 : i32
    %c0_i32_0 = arith.constant 0 : i32
    %c0_i32_1 = arith.constant 0 : i32
    %c0_i32_2 = arith.constant 0 : i32
    return %arg0, %c0_i32, %c0_i32_0, %c0_i32_1 : i32, i32, i32, i32
  }
  func.func @transform_1(%arg0: i32) -> (i32, i32, i32, i32) {
    %c0_i32 = arith.constant 0 : i32
    %c0_i32_0 = arith.constant 0 : i32
    %c0_i32_1 = arith.constant 0 : i32
    %c0_i32_2 = arith.constant 0 : i32
    return %arg0, %c0_i32, %c0_i32_0, %c0_i32_1 : i32, i32, i32, i32
  }
  func.func @transform_2(%arg0: i32) -> (i32, i32) {
    %c0_i32 = arith.constant 0 : i32
    %c0_i32_0 = arith.constant 0 : i32
    %c0_i32_1 = arith.constant 0 : i32
    return %c0_i32, %c0_i32_0 : i32, i32
  }
}

</mosaic_0001>

<llo_original>
// kernel: tpu_custom_call.1
$region0: #{tpu_custom_call.1}
  #allocation0 [shape = 'u32[]', space=smem, size = 0x4, offset = 0x4, fixed_abs, tag = 'smem constant byte address 0x4 - core index']
  #allocation1 [shape = 'u32[144,128]{1,0:T(1,128)}', space=vmem, size = 0x12000, scoped, tag = 'internal scratch']
  #allocation2 [shape = 'f32[2,18,18]{2,1,0:T(8,128)}', space=vmem, size = 0x6000, scoped, tag = 'scratch operand']
  #allocation3 [shape = 'f32[2,18,18]{2,1,0:T(8,128)}', space=vmem, size = 0x6000, scoped, tag = 'scratch operand']
  #allocation4 [shape = 'f32[16,16]{1,0:T(8,128)}', space=vmem, size = 0x2000, scoped, tag = 'scratch operand']
  #allocation11 [shape = 's32[]', space=sflag, size = 0x4, offset = 0, fixed_abs, tag = 'sflag constant byte address 0x0 - dummy sync flag']
  #allocation13 [shape = 's32[]', space=sflag, size = 0x4, offset = 0, fixed_abs, tag = 'sflag constant byte address 0x0 - dummy sync flag']
  %s0 = inlined_call_operand.hbm [shape: f32[2,4,16,16], index: 0, kind: input, shape index: {}]
  %s1 = inlined_call_operand.hbm [shape: f32[2,4,16,16], index: 1, kind: input, shape index: {}]
  %s2 = inlined_call_operand.hbm [shape: f32[1,1], index: 2, kind: output, shape index: {}]
  %s3 = sld [smem:[#allocation0]]
  $region34: #{tpu_custom_call.1} parent=0
    _
  %s5 = ssub.s32 1, %s3
  %s6 = scalar_select 0, %s5, %s3
  $region1: #{tpu_custom_call.1} parent=0
    #allocation5 [shape = 'u8[16384]{0}', space=vmem, size = 0x4000, scoped, tag = 'input window, operand 0, single buffered']
    #allocation6 [shape = 's32[1]{0}', space=sflag, size = 0x4, scoped, tag = 'scoped memory for tpu_custom_call.1']
    #allocation7 [shape = 's32[1]{0}', space=sflag, size = 0x4, scoped, tag = 'scoped memory for tpu_custom_call.1']
    #allocation8 [shape = 'u8[16384]{0}', space=vmem, size = 0x4000, scoped, tag = 'input window, operand 1, single buffered']
    #allocation9 [shape = 's32[1]{0}', space=sflag, size = 0x4, scoped, tag = 'scoped memory for tpu_custom_call.1']
    #allocation10 [shape = 'u8[512]{0}', space=vmem, size = 0x400, scoped, tag = 'output window, operand 0, single buffered']
    %7 = vsyncpa [#allocation6], 0
    %8 = vsyncpa [#allocation9], 0
    %9 = vsyncpa [#allocation7], 0
    // Predicated region
    $region2: #{tpu_custom_call.1} parent=1 // pred_check
      _
    $region3: #{tpu_custom_call.1} parent=1 // pred_check_branch
      %11 = sbr.rel (0) target = $region5
    $region4: #{tpu_custom_call.1} parent=1 // pred_region
      #allocation12 [shape = 'u32[6]{0}', space=smem, size = 0x18, scoped, tag = 'DMA stride descriptor']
      %s13 = ssub.s32 512, 512
      %14 = vsyncadd [#allocation6], %s13
      %s16 = sshll.u32 1, 14
      %s17 = sxor.u32 4294967295, %s16
      %s19 = sld [smem:[#allocation0]]
      %s20 = sadd.s32 2, %s19
      %s22 = sshll.u32 7, 26
      %s23 = sxor.u32 4294967295, %s22
      %s24 = sand.u32 0, %s23
      %s25 = sshll.u32 %s20, 26
      %s26 = sor.u32 %s24, %s25
      %s27 = sshll.u32 [#allocation5], 4
      %s28 = int_to_ptr.vmem [resolvable:$true] %s27
      %34 = sst [smem:[#allocation12]] 1024
      %s35 = scalar_lea.smem [#allocation12], 1
      %36 = sst [smem:[%s35]] 256
      %s37 = scalar_lea.smem [#allocation12], 2
      %38 = sst [smem:[%s37]] 2
      %s39 = scalar_lea.smem [#allocation12], 3
      %40 = sst [smem:[%s39]] 128
      %s41 = scalar_lea.smem [#allocation12], 4
      %42 = sst [smem:[%s41]] 128
      %s43 = scalar_lea.smem [#allocation12], 5
      %44 = sst [smem:[%s43]] 8
      %46 = dma.general %s0, 512, %s28, [#allocation6], [#allocation11], [#allocation12], %s26, 0
    $region5: #{tpu_custom_call.1} parent=1 // pred_fallthru
      _
    // Predicated region
    $region6: #{tpu_custom_call.1} parent=1 // pred_check
      _
    $region7: #{tpu_custom_call.1} parent=1 // pred_check_branch
      %48 = sbr.rel (0) target = $region9
    $region8: #{tpu_custom_call.1} parent=1 // pred_region
      #allocation14 [shape = 'u32[6]{0}', space=smem, size = 0x18, scoped, tag = 'DMA stride descriptor']
      %s50 = ssub.s32 512, 512
      %51 = vsyncadd [#allocation9], %s50
      %s53 = sshll.u32 1, 14
      %s54 = sxor.u32 4294967295, %s53
      %s56 = sld [smem:[#allocation0]]
      %s57 = sadd.s32 2, %s56
      %s59 = sshll.u32 7, 26
      %s60 = sxor.u32 4294967295, %s59
      %s61 = sand.u32 0, %s60
      %s62 = sshll.u32 %s57, 26
      %s63 = sor.u32 %s61, %s62
      %s64 = sshll.u32 [#allocation8], 4
      %s65 = int_to_ptr.vmem [resolvable:$true] %s64
      %71 = sst [smem:[#allocation14]] 1024
      %s72 = scalar_lea.smem [#allocation14], 1
      %73 = sst [smem:[%s72]] 256
      %s74 = scalar_lea.smem [#allocation14], 2
      %75 = sst [smem:[%s74]] 2
      %s76 = scalar_lea.smem [#allocation14], 3
      %77 = sst [smem:[%s76]] 128
      %s78 = scalar_lea.smem [#allocation14], 4
      %79 = sst [smem:[%s78]] 128
      %s80 = scalar_lea.smem [#allocation14], 5
      %81 = sst [smem:[%s80]] 8
      %83 = dma.general %s1, 512, %s65, [#allocation9], [#allocation13], [#allocation14], %s63, 0
    $region9: #{tpu_custom_call.1} parent=1 // pred_fallthru
      _
    // Predicated region
    $region10: #{tpu_custom_call.1} parent=1 // pred_check
      _
    $region11: #{tpu_custom_call.1} parent=1 // pred_check_branch
      %85 = sbr.rel (0) target = $region13
    $region12: #{tpu_custom_call.1} parent=1 // pred_region
      %86 = dma.done [#allocation6], 512
    $region13: #{tpu_custom_call.1} parent=1 // pred_fallthru
      _
    // Predicated region
    $region14: #{tpu_custom_call.1} parent=1 // pred_check
      _
    $region15: #{tpu_custom_call.1} parent=1 // pred_check_branch
      %88 = sbr.rel (0) target = $region17
    $region16: #{tpu_custom_call.1} parent=1 // pred_region
      %89 = dma.done [#allocation9], 512
    $region17: #{tpu_custom_call.1} parent=1 // pred_fallthru
      _
    %p90 = scmp.eq.s32.totalorder 0, 0
    // Predicated region
    $region18: #{tpu_custom_call.1} parent=1 // pred_check
      %p91 = pneg %p90
    $region19: #{tpu_custom_call.1} parent=1 // pred_check_branch
      %93 = sbr.rel (%p91) target = $region21
    $region20: #{tpu_custom_call.1} parent=1 // pred_region
      %vm94 = vcmask 146432
      %95 = vst.msk [vmem:[#allocation2] sm:$0xff] %vm94, 0.0
      %96 = vst.msk [vmem:[#allocation2 + $0x8] sm:$0xff] %vm94, 0.0
      %vm97 = vcmask 140288
      %98 = vst.msk [vmem:[#allocation2 + $0x10] sm:$0x3] %vm97, 0.0
      %99 = vst.msk [vmem:[#allocation2 + $0x18] sm:$0xff] %vm94, 0.0
      %100 = vst.msk [vmem:[#allocation2 + $0x20] sm:$0xff] %vm94, 0.0
      %101 = vst.msk [vmem:[#allocation2 + $0x28] sm:$0x3] %vm97, 0.0
      %102 = vst.msk [vmem:[#allocation3] sm:$0xff] %vm94, 0.0
      %103 = vst.msk [vmem:[#allocation3 + $0x8] sm:$0xff] %vm94, 0.0
      %104 = vst.msk [vmem:[#allocation3 + $0x10] sm:$0x3] %vm97, 0.0
      %105 = vst.msk [vmem:[#allocation3 + $0x18] sm:$0xff] %vm94, 0.0
      %106 = vst.msk [vmem:[#allocation3 + $0x20] sm:$0xff] %vm94, 0.0
      %107 = vst.msk [vmem:[#allocation3 + $0x28] sm:$0x3] %vm97, 0.0
      %vm108 = vcmask 130048
      %109 = vst.msk [vmem:[#allocation4] sm:$0xff] %vm108, 0.0
      %110 = vst.msk [vmem:[#allocation4 + $0x8] sm:$0xff] %vm108, 0.0
    $region21: #{tpu_custom_call.1} parent=1 // pred_fallthru
      _
    %v111 = vld [vmem:[#allocation5] sm:$0xff]
    %v112 = vld [vmem:[#allocation5 + $0x8] sm:$0xff]
    %v113 = vld [vmem:[#allocation5 + $0x10] sm:$0xff]
    %v114 = vld [vmem:[#allocation5 + $0x18] sm:$0xff]
    %119 = vrot.lane.b32.xlu0 %v111, 1
    %v120 = vpop.permute.xlu0 %119
    %121 = vrot.lane.b32.xlu0 %v112, 1
    %v122 = vpop.permute.xlu0 %121
    %123 = vrot.lane.b32.xlu0 %v113, 1
    %v124 = vpop.permute.xlu0 %123
    %125 = vrot.lane.b32.xlu0 %v114, 1
    %v126 = vpop.permute.xlu0 %125
    %vm131 = vcmask 138248
    %132 = vst.msk [vmem:[#allocation2 + $0x1] sm:$0xff] %vm131, %v120
    %133 = vst.msk [vmem:[#allocation2 + $0x9] sm:$0xff] %vm131, %v122
    %134 = vst.msk [vmem:[#allocation2 + $0x19] sm:$0xff] %vm131, %v124
    %135 = vst.msk [vmem:[#allocation2 + $0x21] sm:$0xff] %vm131, %v126
    %v136 = vld [vmem:[#allocation8] sm:$0xff]
    %v137 = vld [vmem:[#allocation8 + $0x8] sm:$0xff]
    %v138 = vld [vmem:[#allocation8 + $0x10] sm:$0xff]
    %v139 = vld [vmem:[#allocation8 + $0x18] sm:$0xff]
    %144 = vrot.lane.b32.xlu0 %v136, 1
    %v145 = vpop.permute.xlu0 %144
    %146 = vrot.lane.b32.xlu0 %v137, 1
    %v147 = vpop.permute.xlu0 %146
    %148 = vrot.lane.b32.xlu0 %v138, 1
    %v149 = vpop.permute.xlu0 %148
    %150 = vrot.lane.b32.xlu0 %v139, 1
    %v151 = vpop.permute.xlu0 %150
    %156 = vst.msk [vmem:[#allocation3 + $0x1] sm:$0xff] %vm131, %v145
    %157 = vst.msk [vmem:[#allocation3 + $0x9] sm:$0xff] %vm131, %v147
    %158 = vst.msk [vmem:[#allocation3 + $0x19] sm:$0xff] %vm131, %v149
    %159 = vst.msk [vmem:[#allocation3 + $0x21] sm:$0xff] %vm131, %v151
    %v160 = vld [vmem:[#allocation2] sm:$0xff]
    %v161 = vld [vmem:[#allocation2 + $0x8] sm:$0xff]
    %v162 = vld [vmem:[#allocation2 + $0x10] sm:$0x3]
    %v163 = vld [vmem:[#allocation2 + $0x18] sm:$0xff]
    %v164 = vld [vmem:[#allocation2 + $0x20] sm:$0xff]
    %v165 = vld [vmem:[#allocation2 + $0x28] sm:$0x3]
    %172 = vrot.lane.b32.xlu0 %v160, 2
    %v173 = vpop.permute.xlu0 %172
    %174 = vrot.lane.b32.xlu0 %v161, 2
    %v175 = vpop.permute.xlu0 %174
    %176 = vrot.lane.b32.xlu0 %v162, 2
    %v177 = vpop.permute.xlu0 %176
    %178 = vrot.lane.b32.xlu0 %v163, 2
    %v179 = vpop.permute.xlu0 %178
    %180 = vrot.lane.b32.xlu0 %v164, 2
    %v181 = vpop.permute.xlu0 %180
    %182 = vrot.lane.b32.xlu0 %v165, 2
    %v183 = vpop.permute.xlu0 %182
    %v190 = vsub.f32 %v160, %v173
    %v191 = vsub.f32 %v161, %v175
    %v192 = vsub.f32 %v162, %v177
    %v193 = vsub.f32 %v163, %v179
    %v194 = vsub.f32 %v164, %v181
    %v195 = vsub.f32 %v165, %v183
    %v196 = vmul.f32 %v160, 2.0
    %v197 = vmul.f32 %v161, 2.0
    %v198 = vmul.f32 %v162, 2.0
    %v199 = vmul.f32 %v163, 2.0
    %v200 = vmul.f32 %v164, 2.0
    %v201 = vmul.f32 %v165, 2.0
    %208 = vrot.lane.b32.xlu0 %v196, 127
    %v209 = vpop.permute.xlu0 %208
    %210 = vrot.lane.b32.xlu0 %v197, 127
    %v211 = vpop.permute.xlu0 %210
    %212 = vrot.lane.b32.xlu0 %v198, 127
    %v213 = vpop.permute.xlu0 %212
    %214 = vrot.lane.b32.xlu0 %v199, 127
    %v215 = vpop.permute.xlu0 %214
    %216 = vrot.lane.b32.xlu0 %v200, 127
    %v217 = vpop.permute.xlu0 %216
    %218 = vrot.lane.b32.xlu0 %v201, 127
    %v219 = vpop.permute.xlu0 %218
    %v226 = vadd.f32 %v160, %v209
    %v227 = vadd.f32 %v161, %v211
    %v228 = vadd.f32 %v162, %v213
    %v229 = vadd.f32 %v163, %v215
    %v230 = vadd.f32 %v164, %v217
    %v231 = vadd.f32 %v165, %v219
    %232 = vrot.lane.b32.xlu0 %v160, 126
    %v233 = vpop.permute.xlu0 %232
    %234 = vrot.lane.b32.xlu0 %v161, 126
    %v235 = vpop.permute.xlu0 %234
    %236 = vrot.lane.b32.xlu0 %v162, 126
    %v237 = vpop.permute.xlu0 %236
    %238 = vrot.lane.b32.xlu0 %v163, 126
    %v239 = vpop.permute.xlu0 %238
    %240 = vrot.lane.b32.xlu0 %v164, 126
    %v241 = vpop.permute.xlu0 %240
    %242 = vrot.lane.b32.xlu0 %v165, 126
    %v243 = vpop.permute.xlu0 %242
    %v250 = vadd.f32 %v226, %v233
    %v251 = vadd.f32 %v227, %v235
    %v252 = vadd.f32 %v228, %v237
    %v253 = vadd.f32 %v229, %v239
    %v254 = vadd.f32 %v230, %v241
    %v255 = vadd.f32 %v231, %v243
    %v256 = vmul.f32 %v190, 2.0
    %v257 = vmul.f32 %v191, 2.0
    %v258 = vmul.f32 %v192, 2.0
    %v259 = vmul.f32 %v193, 2.0
    %v260 = vmul.f32 %v194, 2.0
    %v261 = vmul.f32 %v195, 2.0
    %vm268 = vcmask 1046528
    %v269 = vrot.slane %v256, 1
    %v270 = vrot.slane %v257, 1
    %v271 = vsel %vm268, %v269, %v270
    %v272 = vrot.slane %v258, 1
    %v273 = vsel %vm268, %v270, %v272
    %v274 = vrot.slane %v259, 1
    %v275 = vrot.slane %v260, 1
    %v276 = vsel %vm268, %v274, %v275
    %v277 = vrot.slane %v261, 1
    %v278 = vsel %vm268, %v275, %v277
    %v283 = vadd.f32 %v190, %v271
    %v284 = vadd.f32 %v191, %v273
    %v285 = vadd.f32 %v193, %v276
    %v286 = vadd.f32 %v194, %v278
    %vm293 = vcmask 1045504
    %v294 = vrot.slane %v190, 2
    %v295 = vrot.slane %v191, 2
    %v296 = vsel %vm293, %v294, %v295
    %v297 = vrot.slane %v192, 2
    %v298 = vsel %vm293, %v295, %v297
    %v299 = vrot.slane %v193, 2
    %v300 = vrot.slane %v194, 2
    %v301 = vsel %vm293, %v299, %v300
    %v302 = vrot.slane %v195, 2
    %v303 = vsel %vm293, %v300, %v302
    %v308 = vadd.f32 %v283, %v296
    %v309 = vadd.f32 %v284, %v298
    %v310 = vadd.f32 %v285, %v301
    %v311 = vadd.f32 %v286, %v303
    %v318 = vrot.slane %v250, 2
    %v319 = vrot.slane %v251, 2
    %v320 = vsel %vm293, %v318, %v319
    %v321 = vrot.slane %v252, 2
    %v322 = vsel %vm293, %v319, %v321
    %v323 = vrot.slane %v253, 2
    %v324 = vrot.slane %v254, 2
    %v325 = vsel %vm293, %v323, %v324
    %v326 = vrot.slane %v255, 2
    %v327 = vsel %vm293, %v324, %v326
    %v332 = vsub.f32 %v250, %v320
    %v333 = vsub.f32 %v251, %v322
    %v334 = vsub.f32 %v253, %v325
    %v335 = vsub.f32 %v254, %v327
    %v336 = vand.u32 2147483647, %v308
    %v337 = vand.u32 2147483647, %v309
    %v338 = vand.u32 2147483647, %v310
    %v339 = vand.u32 2147483647, %v311
    %v340 = vand.u32 2147483647, %v332
    %v341 = vand.u32 2147483647, %v333
    %v342 = vand.u32 2147483647, %v334
    %v343 = vand.u32 2147483647, %v335
    %348 = vrot.lane.b32.xlu0 %v340, 2
    %v349 = vpop.permute.xlu0 %348
    %350 = vrot.lane.b32.xlu0 %v341, 2
    %v351 = vpop.permute.xlu0 %350
    %352 = vrot.lane.b32.xlu0 %v342, 2
    %v353 = vpop.permute.xlu0 %352
    %354 = vrot.lane.b32.xlu0 %v343, 2
    %v355 = vpop.permute.xlu0 %354
    %v360 = vadd.f32 %v336, %v349
    %v361 = vadd.f32 %v337, %v351
    %v362 = vadd.f32 %v338, %v353
    %v363 = vadd.f32 %v339, %v355
    %v364 = vld [vmem:[#allocation3] sm:$0xff]
    %v365 = vld [vmem:[#allocation3 + $0x8] sm:$0xff]
    %v366 = vld [vmem:[#allocation3 + $0x10] sm:$0x3]
    %v367 = vld [vmem:[#allocation3 + $0x18] sm:$0xff]
    %v368 = vld [vmem:[#allocation3 + $0x20] sm:$0xff]
    %v369 = vld [vmem:[#allocation3 + $0x28] sm:$0x3]
    %376 = vrot.lane.b32.xlu0 %v364, 2
    %v377 = vpop.permute.xlu0 %376
    %378 = vrot.lane.b32.xlu0 %v365, 2
    %v379 = vpop.permute.xlu0 %378
    %380 = vrot.lane.b32.xlu0 %v366, 2
    %v381 = vpop.permute.xlu0 %380
    %382 = vrot.lane.b32.xlu0 %v367, 2
    %v383 = vpop.permute.xlu0 %382
    %384 = vrot.lane.b32.xlu0 %v368, 2
    %v385 = vpop.permute.xlu0 %384
    %386 = vrot.lane.b32.xlu0 %v369, 2
    %v387 = vpop.permute.xlu0 %386
    %v394 = vsub.f32 %v364, %v377
    %v395 = vsub.f32 %v365, %v379
    %v396 = vsub.f32 %v366, %v381
    %v397 = vsub.f32 %v367, %v383
    %v398 = vsub.f32 %v368, %v385
    %v399 = vsub.f32 %v369, %v387
    %v400 = vmul.f32 %v364, 2.0
    %v401 = vmul.f32 %v365, 2.0
    %v402 = vmul.f32 %v366, 2.0
    %v403 = vmul.f32 %v367, 2.0
    %v404 = vmul.f32 %v368, 2.0
    %v405 = vmul.f32 %v369, 2.0
    %412 = vrot.lane.b32.xlu0 %v400, 127
    %v413 = vpop.permute.xlu0 %412
    %414 = vrot.lane.b32.xlu0 %v401, 127
    %v415 = vpop.permute.xlu0 %414
    %416 = vrot.lane.b32.xlu0 %v402, 127
    %v417 = vpop.permute.xlu0 %416
    %418 = vrot.lane.b32.xlu0 %v403, 127
    %v419 = vpop.permute.xlu0 %418
    %420 = vrot.lane.b32.xlu0 %v404, 127
    %v421 = vpop.permute.xlu0 %420
    %422 = vrot.lane.b32.xlu0 %v405, 127
    %v423 = vpop.permute.xlu0 %422
    %v430 = vadd.f32 %v364, %v413
    %v431 = vadd.f32 %v365, %v415
    %v432 = vadd.f32 %v366, %v417
    %v433 = vadd.f32 %v367, %v419
    %v434 = vadd.f32 %v368, %v421
    %v435 = vadd.f32 %v369, %v423
    %436 = vrot.lane.b32.xlu0 %v364, 126
    %v437 = vpop.permute.xlu0 %436
    %438 = vrot.lane.b32.xlu0 %v365, 126
    %v439 = vpop.permute.xlu0 %438
    %440 = vrot.lane.b32.xlu0 %v366, 126
    %v441 = vpop.permute.xlu0 %440
    %442 = vrot.lane.b32.xlu0 %v367, 126
    %v443 = vpop.permute.xlu0 %442
    %444 = vrot.lane.b32.xlu0 %v368, 126
    %v445 = vpop.permute.xlu0 %444
    %446 = vrot.lane.b32.xlu0 %v369, 126
    %v447 = vpop.permute.xlu0 %446
    %v454 = vadd.f32 %v430, %v437
    %v455 = vadd.f32 %v431, %v439
    %v456 = vadd.f32 %v432, %v441
    %v457 = vadd.f32 %v433, %v443
    %v458 = vadd.f32 %v434, %v445
    %v459 = vadd.f32 %v435, %v447
    %v460 = vmul.f32 %v394, 2.0
    %v461 = vmul.f32 %v395, 2.0
    %v462 = vmul.f32 %v396, 2.0
    %v463 = vmul.f32 %v397, 2.0
    %v464 = vmul.f32 %v398, 2.0
    %v465 = vmul.f32 %v399, 2.0
    %v472 = vrot.slane %v460, 1
    %v473 = vrot.slane %v461, 1
    %v474 = vsel %vm268, %v472, %v473
    %v475 = vrot.slane %v462, 1
    %v476 = vsel %vm268, %v473, %v475
    %v477 = vrot.slane %v463, 1
    %v478 = vrot.slane %v464, 1
    %v479 = vsel %vm268, %v477, %v478
    %v480 = vrot.slane %v465, 1
    %v481 = vsel %vm268, %v478, %v480
    %v486 = vadd.f32 %v394, %v474
    %v487 = vadd.f32 %v395, %v476
    %v488 = vadd.f32 %v397, %v479
    %v489 = vadd.f32 %v398, %v481
    %v496 = vrot.slane %v394, 2
    %v497 = vrot.slane %v395, 2
    %v498 = vsel %vm293, %v496, %v497
    %v499 = vrot.slane %v396, 2
    %v500 = vsel %vm293, %v497, %v499
    %v501 = vrot.slane %v397, 2
    %v502 = vrot.slane %v398, 2
    %v503 = vsel %vm293, %v501, %v502
    %v504 = vrot.slane %v399, 2
    %v505 = vsel %vm293, %v502, %v504
    %v510 = vadd.f32 %v486, %v498
    %v511 = vadd.f32 %v487, %v500
    %v512 = vadd.f32 %v488, %v503
    %v513 = vadd.f32 %v489, %v505
    %v520 = vrot.slane %v454, 2
    %v521 = vrot.slane %v455, 2
    %v522 = vsel %vm293, %v520, %v521
    %v523 = vrot.slane %v456, 2
    %v524 = vsel %vm293, %v521, %v523
    %v525 = vrot.slane %v457, 2
    %v526 = vrot.slane %v458, 2
    %v527 = vsel %vm293, %v525, %v526
    %v528 = vrot.slane %v459, 2
    %v529 = vsel %vm293, %v526, %v528
    %v534 = vsub.f32 %v454, %v522
    %v535 = vsub.f32 %v455, %v524
    %v536 = vsub.f32 %v457, %v527
    %v537 = vsub.f32 %v458, %v529
    %v538 = vand.u32 2147483647, %v510
    %v539 = vand.u32 2147483647, %v511
    %v540 = vand.u32 2147483647, %v512
    %v541 = vand.u32 2147483647, %v513
    %v542 = vand.u32 2147483647, %v534
    %v543 = vand.u32 2147483647, %v535
    %v544 = vand.u32 2147483647, %v536
    %v545 = vand.u32 2147483647, %v537
    %550 = vrot.lane.b32.xlu0 %v542, 2
    %v551 = vpop.permute.xlu0 %550
    %552 = vrot.lane.b32.xlu0 %v543, 2
    %v553 = vpop.permute.xlu0 %552
    %554 = vrot.lane.b32.xlu0 %v544, 2
    %v555 = vpop.permute.xlu0 %554
    %556 = vrot.lane.b32.xlu0 %v545, 2
    %v557 = vpop.permute.xlu0 %556
    %v562 = vadd.f32 %v538, %v551
    %v563 = vadd.f32 %v539, %v553
    %v564 = vadd.f32 %v540, %v555
    %v565 = vadd.f32 %v541, %v557
    %v566 = vsub.f32 %v360, %v562
    %v567 = vsub.f32 %v361, %v563
    %v568 = vsub.f32 %v362, %v564
    %v569 = vsub.f32 %v363, %v565
    %v570 = vand.u32 2147483647, %v566
    %v571 = vand.u32 2147483647, %v567
    %v572 = vand.u32 2147483647, %v568
    %v573 = vand.u32 2147483647, %v569
    %v574 = vld [vmem:[#allocation4] sm:$0xff]
    %v575 = vld [vmem:[#allocation4 + $0x8] sm:$0xff]
    %vm576 = vcmask 146448
    %v577 = vsel %vm576, %v570, 0.0
    %v578 = vsel %vm576, %v572, 0.0
    %v579 = vadd.f32 %v577, %v578
    %v580 = vsel %vm576, %v571, 0.0
    %v581 = vsel %vm576, %v573, 0.0
    %v582 = vadd.f32 %v580, %v581
    %585 = vrot.lane.b32.xlu0 %v579, 126
    %v586 = vpop.permute.xlu0 %585
    %587 = vrot.lane.b32.xlu0 %v582, 126
    %v588 = vpop.permute.xlu0 %587
    %v591 = vadd.f32 %v574, %v586
    %v592 = vadd.f32 %v575, %v588
    %vm593 = vcmask 130048
    %594 = vst.msk [vmem:[#allocation4] sm:$0xff] %vm593, %v591
    %595 = vst.msk [vmem:[#allocation4 + $0x8] sm:$0xff] %vm593, %v592
    // Predicated region
    $region22: #{tpu_custom_call.1} parent=1 // pred_check
      %p596 = pneg %p90
    $region23: #{tpu_custom_call.1} parent=1 // pred_check_branch
      %598 = sbr.rel (%p596) target = $region25
    $region24: #{tpu_custom_call.1} parent=1 // pred_region
      %v599 = vld [vmem:[#allocation4] sm:$0xff]
      %v600 = vld [vmem:[#allocation4 + $0x8] sm:$0xff]
      %v601 = vsel %vm593, %v599, 0.0
      %v602 = vsel %vm593, %v600, 0.0
      %v603 = vadd.f32 %v601, %v602
      %604 = vadd.xlane.f32.xlu0 %v603
      %v605 = vpop.xlane.xlu0 %604
      %v606 = vrot.slane %v605, 4
      %v607 = vadd.f32 %v605, %v606
      %v608 = vrot.slane %v607, 2
      %v609 = vadd.f32 %v607, %v608
      %v610 = vrot.slane %v609, 1
      %v611 = vadd.f32 %v609, %v610
      %s612 = vtos %v611
      %v613 = vstv %s612
      %vm614 = vcmask 0
      %615 = vst.msk [vmem:[#allocation10] sm:$0x1] %vm614, %v613
    $region25: #{tpu_custom_call.1} parent=1 // pred_fallthru
      _
    // Predicated region
    $region26: #{tpu_custom_call.1} parent=1 // pred_check
      _
    $region27: #{tpu_custom_call.1} parent=1 // pred_check_branch
      %617 = sbr.rel (0) target = $region29
    $region28: #{tpu_custom_call.1} parent=1 // pred_region
      %s619 = ssub.s32 16, 16
      %620 = vsyncadd [#allocation7], %s619
      %s622 = sshll.u32 [#allocation10], 4
      %s623 = int_to_ptr.vmem [resolvable:$true] %s622
      %625 = dma.vmem_to_hbm [thread:$0]  %s623, 16, %s2, [#allocation7]
    $region29: #{tpu_custom_call.1} parent=1 // pred_fallthru
      _
    // Predicated region
    $region30: #{tpu_custom_call.1} parent=1 // pred_check
      _
    $region31: #{tpu_custom_call.1} parent=1 // pred_check_branch
      %627 = sbr.rel (0) target = $region33
    $region32: #{tpu_custom_call.1} parent=1 // pred_region
      %628 = dma.done [#allocation7], 16
    $region33: #{tpu_custom_call.1} parent=1 // pred_fallthru
      _
    %629 = vsyncpa [#allocation6], 1
    %630 = vsyncpa [#allocation9], 1
    %631 = vsyncpa [#allocation7], 1

</llo_original>
